<compile_context>
chip_gen: v7x
topology: tpu7x:2x2x1
jax: 0.10.0
libtpu: 0.0.40
codegen_flags: <defaults>
</compile_context>

<pallas_src>
import functools

import jax
import jax.numpy as jnp
from jax.experimental import pallas as pl
from jax.experimental.pallas import tpu as pltpu

_LANE = 128
_SLACK = 2 << 20  # VMEM headroom for compiler scratch / misc buffers


def _round_up(x, m):
    return (x + m - 1) // m * m


def _device_kind():
    try:
        return jax.devices()[0].device_kind.lower()
    except Exception:
        return ""


def _is_v7x():
    kind = _device_kind()
    return ("v7" in kind) or ("7x" in kind)


def _vmem_budget_bytes():
    """Conservative per-TensorCore scoped-VMEM budget (v5e / v6e / v7x)."""
    cap = 64 * 1024 * 1024  # safe lower bound == v7x per-TC VMEM
    try:
        cap = int(pltpu.get_tpu_info().vmem_capacity_bytes)
    except Exception:
        pass
    if _is_v7x():
        # Guard against per-chip (128 MiB) reporting: each v7x TC sees 64 MiB.
        cap = min(cap, 64 * 1024 * 1024)
    return min(cap * 3 // 4, 96 * 1024 * 1024)


# --------------------------------------------------------------------------
# Fused kernel: squeeze + excitation + scale for a (Bt, C, S) block
# --------------------------------------------------------------------------
def _se3d_fused_kernel(x_ref, w1_ref, b1_ref, w2t_ref, b2_ref, o_ref, *, inv_s):
    # x_ref / o_ref : (Bt, C, S) in the streaming dtype
    # w1_ref : (C, Cr) f32   b1_ref : (1, Cr) f32
    # w2t_ref: (C, Cr) f32   b2_ref : (C, 1) f32
    #
    # The block is intentionally re-read from VMEM for the final multiply
    # instead of keeping a block-sized temporary live across the reduction
    # (avoids vreg spills for large blocks; vld slots are far from saturated
    # in this HBM-bound kernel).

    # ---- squeeze: per-(b, c) mean; f32 accumulation, exact (full S extent) --
    pooled = jnp.sum(x_ref[...], axis=-1, keepdims=True,
                     dtype=jnp.float32) * inv_s                    # (Bt, C, 1)

    # ---- excitation: Linear -> ReLU -> Linear -> Sigmoid on the VPU ----
    h = jnp.sum(pooled * w1_ref[...], axis=1, keepdims=True) + b1_ref[...]
    h = jnp.maximum(h, 0.0)                                         # (Bt, 1, Cr)
    g = jnp.sum(w2t_ref[...] * h, axis=-1, keepdims=True) + b2_ref[...]
    g = jax.nn.sigmoid(g)                                           # (Bt, C, 1)

    # ---- scale: broadcast gate over lanes, stream-dtype multiply/store ----
    o_ref[...] = (x_ref[...] * g.astype(o_ref.dtype)).astype(o_ref.dtype)


# --------------------------------------------------------------------------
# Two-pass fallback (very large C*S)
# --------------------------------------------------------------------------
def _pool_kernel(x_ref, pooled_ref, *, inv_s, s_total, tile, ragged):
    s = pl.program_id(1)

    @pl.when(s == 0)
    def _():
        pooled_ref[...] = jnp.zeros_like(pooled_ref)

    x = x_ref[...]
    if ragged:
        # The last S-tile overhangs the array; out-of-bounds VMEM lanes hold
        # unspecified data, so mask them before accumulating.
        col = jax.lax.broadcasted_iota(jnp.int32, x.shape, x.ndim - 1) + s * tile
        x = jnp.where(col < s_total, x, jnp.zeros_like(x))
    pooled_ref[...] += jnp.sum(x, axis=-1, keepdims=True,
                               dtype=jnp.float32) * inv_s


def _scale_kernel(g_ref, x_ref, o_ref):
    # Overhanging output lanes of the ragged last tile are clipped by Pallas
    # on writeback, so no masking is needed here.
    o_ref[...] = (x_ref[...] * g_ref[...].astype(o_ref.dtype)).astype(o_ref.dtype)


# --------------------------------------------------------------------------
# Wrapper
# --------------------------------------------------------------------------
def channel_se_layer_3d(inputs, w1, b1, w2, b2, *, force_two_pass=False,
                        two_pass_tile=None, single_block_max_bytes=4 << 20):
    """ChannelSELayer3D forward.

    inputs: (B, C, D, H, W)
    w1: (C, Cr)  (in, out layout)   b1: (Cr,)
    w2: (Cr, C)  (in, out layout)   b2: (C,)
    """
    B, C, D, H, W = inputs.shape
    S = D * H * W
    Cr = w1.shape[1]
    dsize = jnp.dtype(inputs.dtype).itemsize
    inv_s = float(1.0 / S)

    w1f = w1.astype(jnp.float32)                    # (C, Cr)
    w2t = jnp.transpose(w2.astype(jnp.float32))     # (C, Cr): 2nd linear = lane reduce
    b1_2d = b1.astype(jnp.float32).reshape(1, Cr)
    b2_2d = b2.astype(jnp.float32).reshape(C, 1)
    weight_bytes = int(w1f.size + w2t.size + b1_2d.size + b2_2d.size) * 4

    budget = _vmem_budget_bytes()
    vmem_limit = int(budget)
    usable = budget - 2 * weight_bytes - _SLACK

    # No host-side padding of S (and no final slice): keeps HBM traffic at the
    # minimum ~2 passes over x.
    x_flat = inputs.reshape(B, C, S)

    pb = C * S * dsize            # per-batch streaming bytes
    whole = B * pb                # whole-tensor streaming bytes

    use_single_block = (not force_two_pass) and (2 * whole <= usable) and (
        whole <= single_block_max_bytes or B == 1)
    if use_single_block and B == 1 and _is_v7x() and whole >= (8 << 20):
        # With one batch a fused grid cannot shard across v7x's two
        # TensorCores; the S-tiled two-pass path can.
        use_single_block = False
    use_gridded = (not force_two_pass) and (not use_single_block) and (
        B >= 2 and 4 * pb <= usable)

    fused_cost = pl.CostEstimate(
        flops=2 * B * C * S + 4 * B * C * Cr,
        transcendentals=B * C,
        bytes_accessed=2 * B * C * S * dsize + weight_bytes,
    )

    if use_single_block:
        # Whole problem as one grid-less block: single-buffered in/out (half
        # the VMEM of a double-buffered grid -> doubles fused capacity for
        # B == 1 on v7x), one large DMA each way, zero per-step overhead.
        out_flat = pl.pallas_call(
            functools.partial(_se3d_fused_kernel, inv_s=inv_s),
            out_shape=jax.ShapeDtypeStruct((B, C, S), inputs.dtype),
            compiler_params=pltpu.CompilerParams(vmem_limit_bytes=vmem_limit),
            cost_estimate=fused_cost,
        )(x_flat, w1f, b1_2d, w2t, b2_2d)
    elif use_gridded:
        # Pack several batches per grid step when the per-batch block is small
        # (amortizes ~0.35 us/step overhead, keeps DMAs large), but keep at
        # least two grid steps for pipelining / megacore sharding.
        target = max(pb, min(2 << 20, usable // 4))
        bt = max(1, min(B // 2, target // pb))
        nb = -(-B // bt)
        out_flat = pl.pallas_call(
            functools.partial(_se3d_fused_kernel, inv_s=inv_s),
            out_shape=jax.ShapeDtypeStruct((B, C, S), inputs.dtype),
            grid=(nb,),
            in_specs=[
                pl.BlockSpec((bt, C, S), lambda i: (i, 0, 0)),
                pl.BlockSpec((C, Cr), lambda i: (0, 0)),
                pl.BlockSpec((1, Cr), lambda i: (0, 0)),
                pl.BlockSpec((C, Cr), lambda i: (0, 0)),
                pl.BlockSpec((C, 1), lambda i: (0, 0)),
            ],
            out_specs=pl.BlockSpec((bt, C, S), lambda i: (i, 0, 0)),
            compiler_params=pltpu.CompilerParams(
                dimension_semantics=("parallel",),
                vmem_limit_bytes=vmem_limit),
            cost_estimate=fused_cost,
        )(x_flat, w1f, b1_2d, w2t, b2_2d)
    else:
        # ---- Two-pass fallback: (B, n_tiles) streaming grids over S ----
        max_tile = max(_LANE, ((max(usable, 4 * C * dsize * _LANE)
                                // (4 * C * dsize)) // _LANE) * _LANE)
        if two_pass_tile is not None:
            # Clamp caller-provided tiles up to >= 512 lanes (small tiles fall
            # far below the HBM streaming roofline).
            St = max(4 * _LANE, _round_up(int(two_pass_tile), _LANE))
        else:
            St = max_tile
        St = min(St, max_tile, _round_up(S, _LANE))
        if St >= S:
            St = S
        n_tiles = -(-S // St)
        ragged = (S % St) != 0

        # pass 1: streaming per-channel means -> (B, C, 1) f32
        pooled = pl.pallas_call(
            functools.partial(_pool_kernel, inv_s=inv_s, s_total=S, tile=St,
                              ragged=ragged),
            out_shape=jax.ShapeDtypeStruct((B, C, 1), jnp.float32),
            grid=(B, n_tiles),
            in_specs=[pl.BlockSpec((None, C, St), lambda b, s: (b, 0, s))],
            out_specs=pl.BlockSpec((None, C, 1), lambda b, s: (b, 0, 0)),
            compiler_params=pltpu.CompilerParams(
                dimension_semantics=("parallel", "arbitrary"),
                vmem_limit_bytes=vmem_limit),
            cost_estimate=pl.CostEstimate(
                flops=B * C * S, transcendentals=0,
                bytes_accessed=B * C * S * dsize + B * C * 4),
        )(x_flat)

        # tiny gate MLP for all batches at once in plain XLA
        p2 = pooled[:, :, 0]                                          # (B, C)
        h = jnp.maximum(p2 @ w1f + b1_2d, 0.0)                        # (B, Cr)
        gate = jax.nn.sigmoid(h @ w2.astype(jnp.float32)
                              + b2.astype(jnp.float32)[None, :])      # (B, C)
        gate3 = gate.reshape(B, C, 1)

        # pass 2: broadcast-multiply stream
        out_flat = pl.pallas_call(
            _scale_kernel,
            out_shape=jax.ShapeDtypeStruct((B, C, S), inputs.dtype),
            grid=(B, n_tiles),
            in_specs=[
                pl.BlockSpec((None, C, 1), lambda b, s: (b, 0, 0)),
                pl.BlockSpec((None, C, St), lambda b, s: (b, 0, s)),
            ],
            out_specs=pl.BlockSpec((None, C, St), lambda b, s: (b, 0, s)),
            compiler_params=pltpu.CompilerParams(
                dimension_semantics=("parallel", "parallel"),
                vmem_limit_bytes=vmem_limit),
            cost_estimate=pl.CostEstimate(
                flops=B * C * S, transcendentals=0,
                bytes_accessed=2 * B * C * S * dsize + B * C * 4),
        )(gate3, x_flat)

    return out_flat.reshape(B, C, D, H, W)


def _reference(inputs, w1, b1, w2, b2):
    pooled = jnp.mean(inputs, axis=(2, 3, 4))                        # (B, C)
    h = jnp.maximum(pooled @ w1 + b1, 0.0)
    g = jax.nn.sigmoid(h @ w2 + b2)
    return inputs * g[:, :, None, None, None]


if __name__ == "__main__":
    B, C = 2, 32
    reduction_ratio = 16
    Cr = C // reduction_ratio

    key = jax.random.PRNGKey(0)
    kx, k1, k2, k3, k4, kx2, kx3 = jax.random.split(key, 7)

    # nn.Linear-style init (uniform +/- 1/sqrt(fan_in)); stored as (in, out).
    bound1 = 1.0 / jnp.sqrt(jnp.float32(C))
    bound2 = 1.0 / jnp.sqrt(jnp.float32(Cr))
    w1 = jax.random.uniform(k1, (C, Cr), jnp.float32, -bound1, bound1)
    b1 = jax.random.uniform(k2, (Cr,), jnp.float32, -bound1, bound1)
    w2 = jax.random.uniform(k3, (Cr, C), jnp.float32, -bound2, bound2)
    b2 = jax.random.uniform(k4, (C,), jnp.float32, -bound2, bound2)

    # 1) lane-aligned S (8*8*8 = 512): single-block fused path.
    x = jax.random.normal(kx, (B, C, 8, 8, 8), dtype=jnp.float32)
    out = jax.block_until_ready(channel_se_layer_3d(x, w1, b1, w2, b2))
    ref = _reference(x, w1, b1, w2, b2)
    assert out.shape == x.shape
    assert jnp.allclose(out, ref, atol=1e-5, rtol=1e-5), "fused (aligned) mismatch"

    # 2) unaligned S (5*6*7 = 210): fused path, no host-side pad/slice.
    x2 = jax.random.normal(kx2, (B, C, 5, 6, 7), dtype=jnp.float32)
    out2 = jax.block_until_ready(channel_se_layer_3d(x2, w1, b1, w2, b2))
    ref2 = _reference(x2, w1, b1, w2, b2)
    assert jnp.allclose(out2, ref2, atol=1e-5, rtol=1e-5), "fused (unaligned) mismatch"

    # 3) per-batch gridded fused path (force by disallowing the single block).
    out3 = jax.block_until_ready(
        channel_se_layer_3d(x2, w1, b1, w2, b2, single_block_max_bytes=0))
    assert jnp.allclose(out3, ref2, atol=1e-5, rtol=1e-5), "gridded fused mismatch"

    # 4) two-pass fallback with a ragged last S-tile (8*9*10 = 720, tile 512).
    x3 = jax.random.normal(kx3, (B, C, 8, 9, 10), dtype=jnp.float32)
    out4 = jax.block_until_ready(
        channel_se_layer_3d(x3, w1, b1, w2, b2,
                            force_two_pass=True, two_pass_tile=512))
    ref3 = _reference(x3, w1, b1, w2, b2)
    assert jnp.allclose(out4, ref3, atol=1e-5, rtol=1e-5), "two-pass mismatch"

    print("KERNEL_OK")
</pallas_src>

<mosaic_0001>
module attributes {stable_mosaic.version = 11 : i64} {
  func.func @_se3d_fused_kernel(%arg0: memref<2x32x512xf32, #tpu.memory_space<vmem>>, %arg1: memref<32x2xf32, #tpu.memory_space<vmem>>, %arg2: memref<1x2xf32, #tpu.memory_space<vmem>>, %arg3: memref<32x2xf32, #tpu.memory_space<vmem>>, %arg4: memref<32x1xf32, #tpu.memory_space<vmem>>, %arg5: memref<2x32x512xf32, #tpu.memory_space<vmem>>) attributes {dimension_semantics = [], scalar_prefetch = 0 : i64, scratch_operands = 0 : i64, tpu.core_type = #tpu.core_type<tc>} {
    %c0 = arith.constant 0 : index
    %c0_0 = arith.constant 0 : index
    %c0_1 = arith.constant 0 : index
    %0 = vector.load %arg0[%c0, %c0_0, %c0_1] : memref<2x32x512xf32, #tpu.memory_space<vmem>>, vector<2x32x512xf32>
    %cst = arith.constant dense<0.000000e+00> : vector<2x32xf32>
    %1 = vector.multi_reduction <add>, %0, %cst [2] : vector<2x32x512xf32> to vector<2x32xf32>
    %2 = vector.shape_cast %1 : vector<2x32xf32> to vector<2x32x1xf32>
    %cst_2 = arith.constant 0.001953125 : f32
    %3 = vector.broadcast %cst_2 : f32 to vector<2x32x1xf32>
    %4 = arith.mulf %2, %3 : vector<2x32x1xf32>
    %c0_3 = arith.constant 0 : index
    %c0_4 = arith.constant 0 : index
    %5 = vector.load %arg1[%c0_3, %c0_4] : memref<32x2xf32, #tpu.memory_space<vmem>>, vector<32x2xf32>
    %6 = vector.shape_cast %5 : vector<32x2xf32> to vector<1x32x2xf32>
    %7 = vector.broadcast %4 : vector<2x32x1xf32> to vector<2x32x2xf32>
    %8 = vector.broadcast %6 : vector<1x32x2xf32> to vector<2x32x2xf32>
    %9 = arith.mulf %7, %8 : vector<2x32x2xf32>
    %cst_5 = arith.constant dense<0.000000e+00> : vector<2x2xf32>
    %10 = vector.multi_reduction <add>, %9, %cst_5 [1] : vector<2x32x2xf32> to vector<2x2xf32>
    %11 = vector.shape_cast %10 : vector<2x2xf32> to vector<2x1x2xf32>
    %c0_6 = arith.constant 0 : index
    %c0_7 = arith.constant 0 : index
    %12 = vector.load %arg2[%c0_6, %c0_7] : memref<1x2xf32, #tpu.memory_space<vmem>>, vector<1x2xf32>
    %13 = vector.shape_cast %12 : vector<1x2xf32> to vector<1x1x2xf32>
    %14 = vector.broadcast %13 : vector<1x1x2xf32> to vector<2x1x2xf32>
    %15 = arith.addf %11, %14 : vector<2x1x2xf32>
    %cst_8 = arith.constant 0.000000e+00 : f32
    %16 = vector.broadcast %cst_8 : f32 to vector<2x1x2xf32>
    %17 = arith.maximumf %15, %16 : vector<2x1x2xf32>
    %c0_9 = arith.constant 0 : index
    %c0_10 = arith.constant 0 : index
    %18 = vector.load %arg3[%c0_9, %c0_10] : memref<32x2xf32, #tpu.memory_space<vmem>>, vector<32x2xf32>
    %19 = vector.shape_cast %18 : vector<32x2xf32> to vector<1x32x2xf32>
    %20 = vector.broadcast %19 : vector<1x32x2xf32> to vector<2x32x2xf32>
    %21 = vector.broadcast %17 : vector<2x1x2xf32> to vector<2x32x2xf32>
    %22 = arith.mulf %20, %21 : vector<2x32x2xf32>
    %cst_11 = arith.constant dense<0.000000e+00> : vector<2x32xf32>
    %23 = vector.multi_reduction <add>, %22, %cst_11 [2] : vector<2x32x2xf32> to vector<2x32xf32>
    %24 = vector.shape_cast %23 : vector<2x32xf32> to vector<2x32x1xf32>
    %c0_12 = arith.constant 0 : index
    %c0_13 = arith.constant 0 : index
    %25 = vector.load %arg4[%c0_12, %c0_13] : memref<32x1xf32, #tpu.memory_space<vmem>>, vector<32x1xf32>
    %26 = vector.shape_cast %25 : vector<32x1xf32> to vector<1x32x1xf32>
    %27 = vector.broadcast %26 : vector<1x32x1xf32> to vector<2x32x1xf32>
    %28 = arith.addf %24, %27 : vector<2x32x1xf32>
    %29 = arith.negf %28 : vector<2x32x1xf32>
    %30 = math.exp %29 : vector<2x32x1xf32>
    %cst_14 = arith.constant 1.000000e+00 : f32
    %31 = vector.broadcast %cst_14 : f32 to vector<2x32x1xf32>
    %32 = arith.addf %31, %30 : vector<2x32x1xf32>
    %33 = arith.divf %31, %32 : vector<2x32x1xf32>
    %c0_15 = arith.constant 0 : index
    %c0_16 = arith.constant 0 : index
    %c0_17 = arith.constant 0 : index
    %34 = vector.load %arg0[%c0_15, %c0_16, %c0_17] : memref<2x32x512xf32, #tpu.memory_space<vmem>>, vector<2x32x512xf32>
    %35 = vector.broadcast %33 : vector<2x32x1xf32> to vector<2x32x512xf32>
    %36 = arith.mulf %34, %35 : vector<2x32x512xf32>
    %c0_18 = arith.constant 0 : index
    %c0_19 = arith.constant 0 : index
    %c0_20 = arith.constant 0 : index
    %37 = vector.load %arg5[%c0_18, %c0_19, %c0_20] : memref<2x32x512xf32, #tpu.memory_space<vmem>>, vector<2x32x512xf32>
    tpu.vector_store %arg5[%c0_18, %c0_19, %c0_20], %36 {strides = array<i32>} : memref<2x32x512xf32, #tpu.memory_space<vmem>>, vector<2x32x512xf32>,
    return
  }
}

</mosaic_0001>

<llo_original>
// kernel: tpu_custom_call.1
$region0: #{tpu_custom_call.1}
  #allocation0 [shape = 'u32[]', space=smem, size = 0x4, offset = 0x4, fixed_abs, tag = 'smem constant byte address 0x4 - core index']
  #allocation1 [shape = 'u32[144,128]{1,0:T(1,128)}', space=vmem, size = 0x12000, scoped, tag = 'internal scratch']
  %s0 = inlined_call_operand.hbm [shape: f32[2,32,512], index: 0, kind: input, shape index: {}]
  %s1 = inlined_call_operand.vmem [shape: f32[32,2], index: 1, kind: input, shape index: {}]
  %s2 = inlined_call_operand.vmem [shape: f32[1,2], index: 2, kind: input, shape index: {}]
  %s3 = inlined_call_operand.vmem [shape: f32[32,2], index: 3, kind: input, shape index: {}]
  %s4 = inlined_call_operand.vmem [shape: f32[32,1], index: 4, kind: input, shape index: {}]
  %s5 = inlined_call_operand.hbm [shape: f32[2,32,512], index: 5, kind: output, shape index: {}]
  %s6 = sld [smem:[#allocation0]]
  $region34: #{tpu_custom_call.1} parent=0
    _
  %s8 = ssub.s32 1, %s6
  %s9 = scalar_select 0, %s8, %s6
  $region1: #{tpu_custom_call.1} parent=0
    #allocation2 [shape = 'u8[131072]{0}', space=vmem, size = 0x20000, scoped, tag = 'input window, operand 0, single buffered']
    #allocation3 [shape = 's32[1]{0}', space=sflag, size = 0x4, scoped, tag = 'scoped memory for tpu_custom_call.1']
    #allocation4 [shape = 's32[1]{0}', space=sflag, size = 0x4, scoped, tag = 'scoped memory for tpu_custom_call.1']
    #allocation5 [shape = 'u8[131072]{0}', space=vmem, size = 0x20000, scoped, tag = 'output window, operand 0, single buffered']
    %10 = vsyncpa [#allocation3], 0
    %11 = vsyncpa [#allocation4], 0
    // Predicated region
    $region2: #{tpu_custom_call.1} parent=1 // pred_check
      _
    $region3: #{tpu_custom_call.1} parent=1 // pred_check_branch
      %13 = sbr.rel (0) target = $region5
    $region4: #{tpu_custom_call.1} parent=1 // pred_region
      %s15 = ssub.s32 4096, 4096
      %16 = vsyncadd [#allocation3], %s15
      %s17 = sshll.u32 [#allocation2], 4
      %s18 = int_to_ptr.vmem [resolvable:$true] %s17
      %23 = dma.hbm_to_vmem [thread:$0]  %s0, 4096, %s18, [#allocation3], 512, 512, 32
    $region5: #{tpu_custom_call.1} parent=1 // pred_fallthru
      _
    // Predicated region
    $region6: #{tpu_custom_call.1} parent=1 // pred_check
      _
    $region7: #{tpu_custom_call.1} parent=1 // pred_check_branch
      %25 = sbr.rel (0) target = $region9
    $region8: #{tpu_custom_call.1} parent=1 // pred_region
      _
    $region9: #{tpu_custom_call.1} parent=1 // pred_fallthru
      _
    // Predicated region
    $region10: #{tpu_custom_call.1} parent=1 // pred_check
      _
    $region11: #{tpu_custom_call.1} parent=1 // pred_check_branch
      %27 = sbr.rel (0) target = $region13
    $region12: #{tpu_custom_call.1} parent=1 // pred_region
      _
    $region13: #{tpu_custom_call.1} parent=1 // pred_fallthru
      _
    // Predicated region
    $region14: #{tpu_custom_call.1} parent=1 // pred_check
      _
    $region15: #{tpu_custom_call.1} parent=1 // pred_check_branch
      %29 = sbr.rel (0) target = $region17
    $region16: #{tpu_custom_call.1} parent=1 // pred_region
      _
    $region17: #{tpu_custom_call.1} parent=1 // pred_fallthru
      _
    // Predicated region
    $region18: #{tpu_custom_call.1} parent=1 // pred_check
      _
    $region19: #{tpu_custom_call.1} parent=1 // pred_check_branch
      %31 = sbr.rel (0) target = $region21
    $region20: #{tpu_custom_call.1} parent=1 // pred_region
      _
    $region21: #{tpu_custom_call.1} parent=1 // pred_fallthru
      _
    // Predicated region
    $region22: #{tpu_custom_call.1} parent=1 // pred_check
      _
    $region23: #{tpu_custom_call.1} parent=1 // pred_check_branch
      %33 = sbr.rel (0) target = $region25
    $region24: #{tpu_custom_call.1} parent=1 // pred_region
      %34 = dma.done [#allocation3], 4096
    $region25: #{tpu_custom_call.1} parent=1 // pred_fallthru
      _
    %v35 = vld [vmem:[#allocation2] sm:$0xff]
    %v36 = vld [vmem:[#allocation2 + $0x8] sm:$0xff]
    %v37 = vld [vmem:[#allocation2 + $0x10] sm:$0xff]
    %v38 = vld [vmem:[#allocation2 + $0x18] sm:$0xff]
    %v39 = vld [vmem:[#allocation2 + $0x20] sm:$0xff]
    %v40 = vld [vmem:[#allocation2 + $0x28] sm:$0xff]
    %v41 = vld [vmem:[#allocation2 + $0x30] sm:$0xff]
    %v42 = vld [vmem:[#allocation2 + $0x38] sm:$0xff]
    %v43 = vld [vmem:[#allocation2 + $0x40] sm:$0xff]
    %v44 = vld [vmem:[#allocation2 + $0x48] sm:$0xff]
    %v45 = vld [vmem:[#allocation2 + $0x50] sm:$0xff]
    %v46 = vld [vmem:[#allocation2 + $0x58] sm:$0xff]
    %v47 = vld [vmem:[#allocation2 + $0x60] sm:$0xff]
    %v48 = vld [vmem:[#allocation2 + $0x68] sm:$0xff]
    %v49 = vld [vmem:[#allocation2 + $0x70] sm:$0xff]
    %v50 = vld [vmem:[#allocation2 + $0x78] sm:$0xff]
    %v51 = vld [vmem:[#allocation2 + $0x80] sm:$0xff]
    %v52 = vld [vmem:[#allocation2 + $0x88] sm:$0xff]
    %v53 = vld [vmem:[#allocation2 + $0x90] sm:$0xff]
    %v54 = vld [vmem:[#allocation2 + $0x98] sm:$0xff]
    %v55 = vld [vmem:[#allocation2 + $0xa0] sm:$0xff]
    %v56 = vld [vmem:[#allocation2 + $0xa8] sm:$0xff]
    %v57 = vld [vmem:[#allocation2 + $0xb0] sm:$0xff]
    %v58 = vld [vmem:[#allocation2 + $0xb8] sm:$0xff]
    %v59 = vld [vmem:[#allocation2 + $0xc0] sm:$0xff]
    %v60 = vld [vmem:[#allocation2 + $0xc8] sm:$0xff]
    %v61 = vld [vmem:[#allocation2 + $0xd0] sm:$0xff]
    %v62 = vld [vmem:[#allocation2 + $0xd8] sm:$0xff]
    %v63 = vld [vmem:[#allocation2 + $0xe0] sm:$0xff]
    %v64 = vld [vmem:[#allocation2 + $0xe8] sm:$0xff]
    %v65 = vld [vmem:[#allocation2 + $0xf0] sm:$0xff]
    %v66 = vld [vmem:[#allocation2 + $0xf8] sm:$0xff]
    %v67 = vadd.f32 %v35, %v36
    %v68 = vadd.f32 %v67, %v37
    %v69 = vadd.f32 %v68, %v38
    %70 = vadd.xlane.f32.xlu0 %v69
    %v71 = vpop.xlane.xlu0 %70
    %v72 = vadd.f32 %v39, %v40
    %v73 = vadd.f32 %v72, %v41
    %v74 = vadd.f32 %v73, %v42
    %75 = vadd.xlane.f32.xlu0 %v74
    %v76 = vpop.xlane.xlu0 %75
    %v77 = vadd.f32 %v43, %v44
    %v78 = vadd.f32 %v77, %v45
    %v79 = vadd.f32 %v78, %v46
    %80 = vadd.xlane.f32.xlu0 %v79
    %v81 = vpop.xlane.xlu0 %80
    %v82 = vadd.f32 %v47, %v48
    %v83 = vadd.f32 %v82, %v49
    %v84 = vadd.f32 %v83, %v50
    %85 = vadd.xlane.f32.xlu0 %v84
    %v86 = vpop.xlane.xlu0 %85
    %v87 = vadd.f32 %v51, %v52
    %v88 = vadd.f32 %v87, %v53
    %v89 = vadd.f32 %v88, %v54
    %90 = vadd.xlane.f32.xlu0 %v89
    %v91 = vpop.xlane.xlu0 %90
    %v92 = vadd.f32 %v55, %v56
    %v93 = vadd.f32 %v92, %v57
    %v94 = vadd.f32 %v93, %v58
    %95 = vadd.xlane.f32.xlu0 %v94
    %v96 = vpop.xlane.xlu0 %95
    %v97 = vadd.f32 %v59, %v60
    %v98 = vadd.f32 %v97, %v61
    %v99 = vadd.f32 %v98, %v62
    %100 = vadd.xlane.f32.xlu0 %v99
    %v101 = vpop.xlane.xlu0 %100
    %v102 = vadd.f32 %v63, %v64
    %v103 = vadd.f32 %v102, %v65
    %v104 = vadd.f32 %v103, %v66
    %105 = vadd.xlane.f32.xlu0 %v104
    %v106 = vpop.xlane.xlu0 %105
    %v107 = vmul.f32 %v71, 0.001953125
    %v108 = vmul.f32 %v76, 0.001953125
    %v109 = vmul.f32 %v81, 0.001953125
    %v110 = vmul.f32 %v86, 0.001953125
    %v111 = vmul.f32 %v91, 0.001953125
    %v112 = vmul.f32 %v96, 0.001953125
    %v113 = vmul.f32 %v101, 0.001953125
    %v114 = vmul.f32 %v106, 0.001953125
    %v115 = vld [vmem:[%s1] sm:$0xff]
    %v116 = vld [vmem:[%s1 + $0x8] sm:$0xff]
    %v117 = vld [vmem:[%s1 + $0x10] sm:$0xff]
    %v118 = vld [vmem:[%s1 + $0x18] sm:$0xff]
    %v119 = vmul.f32 %v107, %v115
    %v120 = vmul.f32 %v108, %v116
    %v121 = vmul.f32 %v109, %v117
    %v122 = vmul.f32 %v110, %v118
    %v123 = vmul.f32 %v111, %v115
    %v124 = vmul.f32 %v112, %v116
    %v125 = vmul.f32 %v113, %v117
    %v126 = vmul.f32 %v114, %v118
    %vm127 = vcmask 15360
    %v128 = vsel %vm127, %v119, 0.0
    %v129 = vsel %vm127, %v120, 0.0
    %v130 = vadd.f32 %v128, %v129
    %v131 = vsel %vm127, %v121, 0.0
    %v132 = vadd.f32 %v130, %v131
    %v133 = vsel %vm127, %v122, 0.0
    %v134 = vadd.f32 %v132, %v133
    %v135 = vrot.slane %v134, 4
    %v136 = vadd.f32 %v134, %v135
    %v137 = vrot.slane %v136, 2
    %v138 = vadd.f32 %v136, %v137
    %v139 = vrot.slane %v138, 1
    %v140 = vadd.f32 %v138, %v139
    %v141 = vsel %vm127, %v123, 0.0
    %v142 = vsel %vm127, %v124, 0.0
    %v143 = vadd.f32 %v141, %v142
    %v144 = vsel %vm127, %v125, 0.0
    %v145 = vadd.f32 %v143, %v144
    %v146 = vsel %vm127, %v126, 0.0
    %v147 = vadd.f32 %v145, %v146
    %v148 = vrot.slane %v147, 4
    %v149 = vadd.f32 %v147, %v148
    %v150 = vrot.slane %v149, 2
    %v151 = vadd.f32 %v149, %v150
    %v152 = vrot.slane %v151, 1
    %v153 = vadd.f32 %v151, %v152
    %v154 = vld [vmem:[%s2] sm:$0x1]
    %v155 = vadd.f32 %v140, %v154
    %v156 = vadd.f32 %v153, %v154
    %v157 = vmax.f32 %v155, 0.0
    %v158 = vmax.f32 %v156, 0.0
    %v159 = vld [vmem:[%s3] sm:$0xff]
    %v160 = vld [vmem:[%s3 + $0x8] sm:$0xff]
    %v161 = vld [vmem:[%s3 + $0x10] sm:$0xff]
    %v162 = vld [vmem:[%s3 + $0x18] sm:$0xff]
    %v163 = vlaneseq
    %v164 = vshrl.u32 %v163, 7
    %v165 = vsub.s32 0, %v164
    %v166 = vrot.slane %v157, %v165
    %v167 = vlaneseq
    %v168 = vshrl.u32 %v167, 7
    %v169 = vsub.s32 0, %v168
    %v170 = vrot.slane %v158, %v169
    %v171 = vmul.f32 %v159, %v166
    %v172 = vmul.f32 %v160, %v166
    %v173 = vmul.f32 %v161, %v166
    %v174 = vmul.f32 %v162, %v166
    %v175 = vmul.f32 %v159, %v170
    %v176 = vmul.f32 %v160, %v170
    %v177 = vmul.f32 %v161, %v170
    %v178 = vmul.f32 %v162, %v170
    %v179 = vsel %vm127, %v171, 0.0
    %180 = vadd.xlane.f32.xlu0 %v179
    %v181 = vpop.xlane.xlu0 %180
    %v182 = vsel %vm127, %v172, 0.0
    %183 = vadd.xlane.f32.xlu0 %v182
    %v184 = vpop.xlane.xlu0 %183
    %v185 = vsel %vm127, %v173, 0.0
    %186 = vadd.xlane.f32.xlu0 %v185
    %v187 = vpop.xlane.xlu0 %186
    %v188 = vsel %vm127, %v174, 0.0
    %189 = vadd.xlane.f32.xlu0 %v188
    %v190 = vpop.xlane.xlu0 %189
    %v191 = vsel %vm127, %v175, 0.0
    %192 = vadd.xlane.f32.xlu0 %v191
    %v193 = vpop.xlane.xlu0 %192
    %v194 = vsel %vm127, %v176, 0.0
    %195 = vadd.xlane.f32.xlu0 %v194
    %v196 = vpop.xlane.xlu0 %195
    %v197 = vsel %vm127, %v177, 0.0
    %198 = vadd.xlane.f32.xlu0 %v197
    %v199 = vpop.xlane.xlu0 %198
    %v200 = vsel %vm127, %v178, 0.0
    %201 = vadd.xlane.f32.xlu0 %v200
    %v202 = vpop.xlane.xlu0 %201
    %v203 = vld [vmem:[%s4] sm:$0xff]
    %v204 = vld [vmem:[%s4 + $0x8] sm:$0xff]
    %v205 = vld [vmem:[%s4 + $0x10] sm:$0xff]
    %v206 = vld [vmem:[%s4 + $0x18] sm:$0xff]
    %v207 = vadd.f32 %v181, %v203
    %v208 = vadd.f32 %v184, %v204
    %v209 = vadd.f32 %v187, %v205
    %v210 = vadd.f32 %v190, %v206
    %v211 = vadd.f32 %v193, %v203
    %v212 = vadd.f32 %v196, %v204
    %v213 = vadd.f32 %v199, %v205
    %v214 = vadd.f32 %v202, %v206
    %v215 = vxor.u32 %v207, 2147483648
    %v216 = vxor.u32 %v208, 2147483648
    %v217 = vxor.u32 %v209, 2147483648
    %v218 = vxor.u32 %v210, 2147483648
    %v219 = vxor.u32 %v211, 2147483648
    %v220 = vxor.u32 %v212, 2147483648
    %v221 = vxor.u32 %v213, 2147483648
    %v222 = vxor.u32 %v214, 2147483648
    %v223 = vmul.f32 %v215, 1.442695
    %v224 = vpow.pop %v223
    %v225 = vmul.f32 %v216, 1.442695
    %v226 = vpow.pop %v225
    %v227 = vmul.f32 %v217, 1.442695
    %v228 = vpow.pop %v227
    %v229 = vmul.f32 %v218, 1.442695
    %v230 = vpow.pop %v229
    %v231 = vmul.f32 %v219, 1.442695
    %v232 = vpow.pop %v231
    %v233 = vmul.f32 %v220, 1.442695
    %v234 = vpow.pop %v233
    %v235 = vmul.f32 %v221, 1.442695
    %v236 = vpow.pop %v235
    %v237 = vmul.f32 %v222, 1.442695
    %v238 = vpow.pop %v237
    %v239 = vadd.f32 %v224, 1.0
    %v240 = vadd.f32 %v226, 1.0
    %v241 = vadd.f32 %v228, 1.0
    %v242 = vadd.f32 %v230, 1.0
    %v243 = vadd.f32 %v232, 1.0
    %v244 = vadd.f32 %v234, 1.0
    %v245 = vadd.f32 %v236, 1.0
    %v246 = vadd.f32 %v238, 1.0
    %v247 = vrcp.pop %v239
    %v248 = vmul.f32 1.0, %v247
    %v249 = vrcp.pop %v240
    %v250 = vmul.f32 1.0, %v249
    %v251 = vrcp.pop %v241
    %v252 = vmul.f32 1.0, %v251
    %v253 = vrcp.pop %v242
    %v254 = vmul.f32 1.0, %v253
    %v255 = vrcp.pop %v243
    %v256 = vmul.f32 1.0, %v255
    %v257 = vrcp.pop %v244
    %v258 = vmul.f32 1.0, %v257
    %v259 = vrcp.pop %v245
    %v260 = vmul.f32 1.0, %v259
    %v261 = vrcp.pop %v246
    %v262 = vmul.f32 1.0, %v261
    %264 = vset.pattern.permute.xlu0 0
    %265 = vperm.xlu0 %264, %v248
    %v266 = vpop.permute.xlu0 %265
    %269 = vset.pattern.permute.xlu0 0
    %270 = vperm.xlu0 %269, %v250
    %v271 = vpop.permute.xlu0 %270
    %274 = vset.pattern.permute.xlu0 0
    %275 = vperm.xlu0 %274, %v252
    %v276 = vpop.permute.xlu0 %275
    %279 = vset.pattern.permute.xlu0 0
    %280 = vperm.xlu0 %279, %v254
    %v281 = vpop.permute.xlu0 %280
    %284 = vset.pattern.permute.xlu0 0
    %285 = vperm.xlu0 %284, %v256
    %v286 = vpop.permute.xlu0 %285
    %289 = vset.pattern.permute.xlu0 0
    %290 = vperm.xlu0 %289, %v258
    %v291 = vpop.permute.xlu0 %290
    %294 = vset.pattern.permute.xlu0 0
    %295 = vperm.xlu0 %294, %v260
    %v296 = vpop.permute.xlu0 %295
    %299 = vset.pattern.permute.xlu0 0
    %300 = vperm.xlu0 %299, %v262
    %v301 = vpop.permute.xlu0 %300
    %v303 = vmul.f32 %v35, %v266
    %v304 = vmul.f32 %v36, %v266
    %v305 = vmul.f32 %v37, %v266
    %v306 = vmul.f32 %v38, %v266
    %v307 = vmul.f32 %v39, %v271
    %v308 = vmul.f32 %v40, %v271
    %v309 = vmul.f32 %v41, %v271
    %v310 = vmul.f32 %v42, %v271
    %v311 = vmul.f32 %v43, %v276
    %v312 = vmul.f32 %v44, %v276
    %v313 = vmul.f32 %v45, %v276
    %v314 = vmul.f32 %v46, %v276
    %v315 = vmul.f32 %v47, %v281
    %v316 = vmul.f32 %v48, %v281
    %v317 = vmul.f32 %v49, %v281
    %v318 = vmul.f32 %v50, %v281
    %v319 = vmul.f32 %v51, %v286
    %v320 = vmul.f32 %v52, %v286
    %v321 = vmul.f32 %v53, %v286
    %v322 = vmul.f32 %v54, %v286
    %v323 = vmul.f32 %v55, %v291
    %v324 = vmul.f32 %v56, %v291
    %v325 = vmul.f32 %v57, %v291
    %v326 = vmul.f32 %v58, %v291
    %v327 = vmul.f32 %v59, %v296
    %v328 = vmul.f32 %v60, %v296
    %v329 = vmul.f32 %v61, %v296
    %v330 = vmul.f32 %v62, %v296
    %v331 = vmul.f32 %v63, %v301
    %v332 = vmul.f32 %v64, %v301
    %v333 = vmul.f32 %v65, %v301
    %v334 = vmul.f32 %v66, %v301
    %335 = vst [vmem:[#allocation5] sm:$0xff] %v303
    %336 = vst [vmem:[#allocation5 + $0x8] sm:$0xff] %v304
    %337 = vst [vmem:[#allocation5 + $0x10] sm:$0xff] %v305
    %338 = vst [vmem:[#allocation5 + $0x18] sm:$0xff] %v306
    %339 = vst [vmem:[#allocation5 + $0x20] sm:$0xff] %v307
    %340 = vst [vmem:[#allocation5 + $0x28] sm:$0xff] %v308
    %341 = vst [vmem:[#allocation5 + $0x30] sm:$0xff] %v309
    %342 = vst [vmem:[#allocation5 + $0x38] sm:$0xff] %v310
    %343 = vst [vmem:[#allocation5 + $0x40] sm:$0xff] %v311
    %344 = vst [vmem:[#allocation5 + $0x48] sm:$0xff] %v312
    %345 = vst [vmem:[#allocation5 + $0x50] sm:$0xff] %v313
    %346 = vst [vmem:[#allocation5 + $0x58] sm:$0xff] %v314
    %347 = vst [vmem:[#allocation5 + $0x60] sm:$0xff] %v315
    %348 = vst [vmem:[#allocation5 + $0x68] sm:$0xff] %v316
    %349 = vst [vmem:[#allocation5 + $0x70] sm:$0xff] %v317
    %350 = vst [vmem:[#allocation5 + $0x78] sm:$0xff] %v318
    %351 = vst [vmem:[#allocation5 + $0x80] sm:$0xff] %v319
    %352 = vst [vmem:[#allocation5 + $0x88] sm:$0xff] %v320
    %353 = vst [vmem:[#allocation5 + $0x90] sm:$0xff] %v321
    %354 = vst [vmem:[#allocation5 + $0x98] sm:$0xff] %v322
    %355 = vst [vmem:[#allocation5 + $0xa0] sm:$0xff] %v323
    %356 = vst [vmem:[#allocation5 + $0xa8] sm:$0xff] %v324
    %357 = vst [vmem:[#allocation5 + $0xb0] sm:$0xff] %v325
    %358 = vst [vmem:[#allocation5 + $0xb8] sm:$0xff] %v326
    %359 = vst [vmem:[#allocation5 + $0xc0] sm:$0xff] %v327
    %360 = vst [vmem:[#allocation5 + $0xc8] sm:$0xff] %v328
    %361 = vst [vmem:[#allocation5 + $0xd0] sm:$0xff] %v329
    %362 = vst [vmem:[#allocation5 + $0xd8] sm:$0xff] %v330
    %363 = vst [vmem:[#allocation5 + $0xe0] sm:$0xff] %v331
    %364 = vst [vmem:[#allocation5 + $0xe8] sm:$0xff] %v332
    %365 = vst [vmem:[#allocation5 + $0xf0] sm:$0xff] %v333
    %366 = vst [vmem:[#allocation5 + $0xf8] sm:$0xff] %v334
    // Predicated region
    $region26: #{tpu_custom_call.1} parent=1 // pred_check
      _
    $region27: #{tpu_custom_call.1} parent=1 // pred_check_branch
      %368 = sbr.rel (0) target = $region29
    $region28: #{tpu_custom_call.1} parent=1 // pred_region
      %s370 = ssub.s32 4096, 4096
      %371 = vsyncadd [#allocation4], %s370
      %s372 = sshll.u32 [#allocation5], 4
      %s373 = int_to_ptr.vmem [resolvable:$true] %s372
      %378 = dma.vmem_to_hbm [thread:$0]  %s373, 4096, %s5, [#allocation4], 512, 512, 32
    $region29: #{tpu_custom_call.1} parent=1 // pred_fallthru
      _
    // Predicated region
    $region30: #{tpu_custom_call.1} parent=1 // pred_check
      _
    $region31: #{tpu_custom_call.1} parent=1 // pred_check_branch
      %380 = sbr.rel (0) target = $region33
    $region32: #{tpu_custom_call.1} parent=1 // pred_region
      %381 = dma.done [#allocation4], 4096
    $region33: #{tpu_custom_call.1} parent=1 // pred_fallthru
      _
    %382 = vsyncpa [#allocation3], 1
    %383 = vsyncpa [#allocation4], 1

</llo_original>
